<compile_context>
chip_gen: v6e
topology: v6e:2x2x1
jax: 0.10.0
libtpu: 0.0.40
codegen_flags: <defaults>
</compile_context>

<pallas_src>
import functools

import jax
import jax.numpy as jnp
from jax import lax
from jax.experimental import pallas as pl
from jax.experimental.pallas import tpu as pltpu


def _round_up(x: int, m: int) -> int:
    return (x + m - 1) // m * m


def _reference(x, complex_weight, gamma, beta):
    """Pure-JAX reference mirroring the PyTorch forward (eval mode)."""
    B, S, H = x.shape
    xf = jnp.fft.rfft(x, axis=1, norm="ortho")
    w = complex_weight[..., 0] + 1j * complex_weight[..., 1]     # (1, F, H)
    xf = xf * w
    seq_fft = jnp.fft.irfft(xf, n=S, axis=1, norm="ortho").astype(jnp.float32)
    h = seq_fft + x
    mean = jnp.mean(h, axis=-1, keepdims=True)
    var = jnp.mean(jnp.square(h - mean), axis=-1, keepdims=True)
    return (h - mean) / jnp.sqrt(var + 1e-12) * gamma + beta


def _build_operators(seq_len: int, hidden: int, complex_weight):
    """Builds the two constant (S*H, S*H) operators used by the kernel.

    A (f32): folds ortho rfft -> complex filter -> ortho irfft -> subtraction
        of the per-seq-position channel mean of (filtered + x), such that
            d = x_flat @ A + x_flat  ==  hidden_states - mean_h(hidden_states)
        (flat index j = s*H + h).
    M (bf16): segment-average-and-broadcast operator,
        M[(s,h),(p,k)] = delta(s,p)/H (1/H is a power of two -> exact in bf16);
        used to produce the per-position biased variance from d*d.
    """
    S, H = seq_len, hidden
    F = S // 2 + 1
    SH = S * H
    hp = jax.lax.Precision.HIGHEST  # wrapper-side einsums in full f32

    s = jnp.arange(S, dtype=jnp.float32)
    f = jnp.arange(F, dtype=jnp.float32)
    ang = 2.0 * jnp.pi * f[:, None] * s[None, :] / S            # (F, S)
    scale = 1.0 / jnp.sqrt(jnp.float32(S))
    # forward rfft (norm='ortho'):  X[f] = sum_s (cos - i sin) x[s] / sqrt(S)
    cr = jnp.cos(ang) * scale                                    # (F, S)
    ci = -jnp.sin(ang) * scale                                   # (F, S)
    # inverse irfft (norm='ortho'); imag parts of DC / Nyquist are ignored,
    # matching torch.fft.irfft semantics (sin rows are zero there anyway).
    coef = jnp.full((F,), 2.0, jnp.float32).at[0].set(1.0)
    if S % 2 == 0:
        coef = coef.at[F - 1].set(1.0)
    dr = (jnp.cos(ang).T * coef[None, :]) * scale                # (S, F)
    di = (-jnp.sin(ang).T * coef[None, :]) * scale               # (S, F)

    wre = complex_weight[0, :, :, 0].astype(jnp.float32)         # (F, H)
    wim = complex_weight[0, :, :, 1].astype(jnp.float32)         # (F, H)

    # Per-hidden-channel seq->seq kernel: seq_fft[p, h] = sum_s K[p, s, h] x[s, h]
    K = (jnp.einsum('pf,fh,fs->psh', dr, wre, cr, precision=hp)
         - jnp.einsum('pf,fh,fs->psh', dr, wim, ci, precision=hp)
         + jnp.einsum('pf,fh,fs->psh', di, wim, cr, precision=hp)
         + jnp.einsum('pf,fh,fs->psh', di, wre, ci, precision=hp))

    eye_h = jnp.eye(H, dtype=jnp.float32)
    eye_s = jnp.eye(S, dtype=jnp.float32)
    Kt = jnp.transpose(K, (1, 2, 0))                             # (s, h, p)

    # A = W_op @ (I - M) - M, written out analytically:
    #   A[(s,h),(p,k)] = K[p,s,h]*delta(h,k) - K[p,s,h]/H - delta(s,p)/H
    A = (Kt[:, :, :, None] * eye_h[None, :, None, :]
         - Kt[:, :, :, None] / H
         - eye_s[:, None, :, None] / H).reshape(SH, SH).astype(jnp.float32)

    # M[(s,h),(p,k)] = delta(s,p) / H   (exact in bf16: 1/H is a power of two)
    M = jnp.broadcast_to(eye_s[:, None, :, None] / H,
                         (S, H, S, H)).reshape(SH, SH).astype(jnp.bfloat16)
    return A, M


def _filter_layer_kernel(x_ref, a_ref, m_ref, g_ref, b_ref, o_ref):
    """One lane-dense (TB, S*H) batch tile per grid step."""
    x = x_ref[...]                                               # (TB, SH) f32
    # rfft / filter / irfft / mean-centering in one f32 MXU matmul; the
    # residual (+x) is an exact f32 VPU add so the O(1) part of d never passes
    # through the MXU.
    d = jnp.dot(x, a_ref[...], preferred_element_type=jnp.float32) + x
    # Per-(batch, seq-position) biased variance, broadcast over hidden: one
    # bf16 MXU pass (M entries 1/H are exact in bf16, accumulation is f32).
    dd = (d * d).astype(jnp.bfloat16)
    var = jnp.dot(dd, m_ref[...], preferred_element_type=jnp.float32)
    # TODO(synk): out_dropout is identity here (eval mode / p treated as 0).
    o_ref[...] = d * lax.rsqrt(var + 1e-12) * g_ref[...] + b_ref[...]


@functools.partial(jax.jit, static_argnames=("block_b", "xla_fallback_below"))
def filter_layer(x, complex_weight, gamma, beta, *, block_b=2048,
                 xla_fallback_below=0):
    """x: (B, S, H) f32; complex_weight: (1, S//2+1, H, 2); gamma/beta: (H,).

    block_b: max batch rows per grid step.  2048 (~9 MiB VMEM incl. double
        buffering + constants) is safe on v5e/v6e/v7x; 4096 also fits on v6e.
    xla_fallback_below: optional small-batch escape hatch (plain XLA path when
        B is below this).  Default 0 so the Pallas kernel always runs.
    """
    B, S, H = x.shape
    SH = S * H
    # The fused-operator approach is O((S*H)^2) in constant memory & MXU work;
    # it silently becomes the wrong algorithm for large S*H.
    assert SH <= 1024, "filter_layer fused operator only sized for S*H <= 1024"

    if B < xla_fallback_below:
        return _reference(x, complex_weight, gamma, beta)

    A, M = _build_operators(S, H, complex_weight)
    gamma_t = jnp.tile(gamma.astype(jnp.float32), S).reshape(1, SH)
    beta_t = jnp.tile(beta.astype(jnp.float32), S).reshape(1, SH)

    # Lane-dense layout: flatten (S, H) -> S*H (contiguous, free reshape).
    x2 = x.astype(jnp.float32).reshape(B, SH)

    # Balanced batch tiling: choose an even number of grid steps (>=2 whenever
    # B >= 16) so both v7x TensorCores get work, and size the tile so the last
    # step is balanced instead of padding a whole extra tile.
    max_tb = max(8, _round_up(block_b, 8))
    num_steps = max(2 if B >= 16 else 1, -(-B // max_tb))
    if num_steps > 1 and num_steps % 2:
        num_steps += 1
    tb = _round_up(-(-B // num_steps), 8)
    b_pad = tb * num_steps
    if b_pad != B:
        x2 = jnp.pad(x2, ((0, b_pad - B), (0, 0)))   # padded rows sliced off below

    flops = 4 * b_pad * SH * SH                      # two (tb,SH)@(SH,SH) matmuls
    bytes_accessed = (2 * b_pad * SH * 4             # x in + out
                      + SH * SH * 4 + SH * SH * 2    # A (f32) + M (bf16)
                      + 2 * SH * 4)                  # gamma, beta

    const = lambda shape: pl.BlockSpec(shape, lambda i: (0,) * len(shape))
    out = pl.pallas_call(
        _filter_layer_kernel,
        out_shape=jax.ShapeDtypeStruct((b_pad, SH), jnp.float32),
        grid_spec=pltpu.PrefetchScalarGridSpec(
            num_scalar_prefetch=0,
            grid=(num_steps,),
            in_specs=[
                pl.BlockSpec((tb, SH), lambda i: (i, 0)),   # x batch tile
                const((SH, SH)),                            # fused filter+center op (f32)
                const((SH, SH)),                            # segment-average op (bf16)
                const((1, SH)),                             # LN gamma (tiled over S)
                const((1, SH)),                             # LN beta  (tiled over S)
            ],
            out_specs=pl.BlockSpec((tb, SH), lambda i: (i, 0)),
        ),
        compiler_params=pltpu.CompilerParams(
            dimension_semantics=("parallel",)),
        cost_estimate=pl.CostEstimate(flops=flops,
                                      transcendentals=b_pad * SH,
                                      bytes_accessed=bytes_accessed),
    )(x2, A, M, gamma_t, beta_t)
    return out[:B].reshape(B, S, H)


if __name__ == "__main__":
    # Small shapes consistent with the module: MAX_ITEM_LIST_LENGTH=8, hidden=32.
    B, S, H = 2, 8, 32
    key = jax.random.PRNGKey(0)
    kx, kw, kg, kb = jax.random.split(key, 4)
    x = jax.random.normal(kx, (B, S, H), dtype=jnp.float32)
    # complex_weight ~ randn * 0.02 (matches the module's init)
    complex_weight = jax.random.normal(kw, (1, S // 2 + 1, H, 2),
                                       dtype=jnp.float32) * 0.02
    # non-trivial LayerNorm affine params to exercise the gamma/beta path
    gamma = 1.0 + 0.1 * jax.random.normal(kg, (H,), dtype=jnp.float32)
    beta = 0.1 * jax.random.normal(kb, (H,), dtype=jnp.float32)

    out = jax.block_until_ready(filter_layer(x, complex_weight, gamma, beta))
    ref = _reference(x, complex_weight, gamma, beta)
    assert out.shape == (B, S, H)
    err = float(jnp.max(jnp.abs(out - ref)))
    assert jnp.allclose(out, ref, atol=2e-3, rtol=2e-3), err
    print("KERNEL_OK")
</pallas_src>

<mosaic_0001>
module attributes {stable_mosaic.version = 11 : i64} {
  func.func @_filter_layer_kernel(%arg0: i32, %arg1: memref<8x256xf32, #tpu.memory_space<vmem>>, %arg2: memref<256x256xf32, #tpu.memory_space<vmem>>, %arg3: memref<256x256xbf16, #tpu.memory_space<vmem>>, %arg4: memref<1x256xf32, #tpu.memory_space<vmem>>, %arg5: memref<1x256xf32, #tpu.memory_space<vmem>>, %arg6: memref<8x256xf32, #tpu.memory_space<vmem>>) attributes {dimension_semantics = [#tpu.dimension_semantics<parallel>], iteration_bounds = array<i64: 1>, scalar_prefetch = 0 : i64, scratch_operands = 0 : i64, tpu.core_type = #tpu.core_type<tc>, window_params = [{transform_indices = @transform_0, window_bounds = array<i64: 8, 256>}, {pipeline_mode = #tpu.pipeline_mode<synchronous>, transform_indices = @transform_1, window_bounds = array<i64: 256, 256>}, {pipeline_mode = #tpu.pipeline_mode<synchronous>, transform_indices = @transform_2, window_bounds = array<i64: 256, 256>}, {pipeline_mode = #tpu.pipeline_mode<synchronous>, transform_indices = @transform_3, window_bounds = array<i64: 1, 256>}, {pipeline_mode = #tpu.pipeline_mode<synchronous>, transform_indices = @transform_4, window_bounds = array<i64: 1, 256>}, {transform_indices = @transform_5, window_bounds = array<i64: 8, 256>}]} {
    %c0 = arith.constant 0 : index
    %c0_0 = arith.constant 0 : index
    %0 = vector.load %arg1[%c0, %c0_0] : memref<8x256xf32, #tpu.memory_space<vmem>>, vector<8x256xf32>
    %c0_1 = arith.constant 0 : index
    %c0_2 = arith.constant 0 : index
    %1 = vector.load %arg2[%c0_1, %c0_2] : memref<256x256xf32, #tpu.memory_space<vmem>>, vector<256x256xf32>
    %cst = arith.constant dense<0.000000e+00> : vector<8x256xf32>
    %2 = tpu.matmul %0, %1, %cst {dimension_numbers = #tpu.dot_dimension_numbers<[1], [0], [0], [1], [0, 0, 1, 1], [], []>} : vector<8x256xf32>, vector<256x256xf32>, vector<8x256xf32> -> vector<8x256xf32>
    %3 = arith.addf %2, %0 : vector<8x256xf32>
    %4 = arith.mulf %3, %3 : vector<8x256xf32>
    %5 = arith.truncf %4 : vector<8x256xf32> to vector<8x256xbf16>
    %c0_3 = arith.constant 0 : index
    %c0_4 = arith.constant 0 : index
    %6 = vector.load %arg3[%c0_3, %c0_4] : memref<256x256xbf16, #tpu.memory_space<vmem>>, vector<256x256xbf16>
    %cst_5 = arith.constant dense<0.000000e+00> : vector<8x256xf32>
    %7 = tpu.matmul %5, %6, %cst_5 {dimension_numbers = #tpu.dot_dimension_numbers<[1], [0], [0], [1], [0, 0, 1, 1], [], []>} : vector<8x256xbf16>, vector<256x256xbf16>, vector<8x256xf32> -> vector<8x256xf32>
    %cst_6 = arith.constant 9.99999996E-13 : f32
    %8 = vector.broadcast %cst_6 : f32 to vector<8x256xf32>
    %9 = arith.addf %7, %8 : vector<8x256xf32>
    %10 = math.rsqrt %9 : vector<8x256xf32>
    %11 = arith.mulf %3, %10 : vector<8x256xf32>
    %c0_7 = arith.constant 0 : index
    %c0_8 = arith.constant 0 : index
    %12 = vector.load %arg4[%c0_7, %c0_8] : memref<1x256xf32, #tpu.memory_space<vmem>>, vector<1x256xf32>
    %13 = vector.broadcast %12 : vector<1x256xf32> to vector<8x256xf32>
    %14 = arith.mulf %11, %13 : vector<8x256xf32>
    %c0_9 = arith.constant 0 : index
    %c0_10 = arith.constant 0 : index
    %15 = vector.load %arg5[%c0_9, %c0_10] : memref<1x256xf32, #tpu.memory_space<vmem>>, vector<1x256xf32>
    %16 = vector.broadcast %15 : vector<1x256xf32> to vector<8x256xf32>
    %17 = arith.addf %14, %16 : vector<8x256xf32>
    %c0_11 = arith.constant 0 : index
    %c0_12 = arith.constant 0 : index
    %18 = vector.load %arg6[%c0_11, %c0_12] : memref<8x256xf32, #tpu.memory_space<vmem>>, vector<8x256xf32>
    tpu.vector_store %arg6[%c0_11, %c0_12], %17 {strides = array<i32>} : memref<8x256xf32, #tpu.memory_space<vmem>>, vector<8x256xf32>,
    return
  }
  func.func @transform_0(%arg0: i32) -> (i32, i32) {
    %c0_i32 = arith.constant 0 : i32
    %c0_i32_0 = arith.constant 0 : i32
    return %arg0, %c0_i32 : i32, i32
  }
  func.func @transform_1(%arg0: i32) -> (i32, i32) {
    %c0_i32 = arith.constant 0 : i32
    %c0_i32_0 = arith.constant 0 : i32
    %c0_i32_1 = arith.constant 0 : i32
    return %c0_i32, %c0_i32_0 : i32, i32
  }
  func.func @transform_2(%arg0: i32) -> (i32, i32) {
    %c0_i32 = arith.constant 0 : i32
    %c0_i32_0 = arith.constant 0 : i32
    %c0_i32_1 = arith.constant 0 : i32
    return %c0_i32, %c0_i32_0 : i32, i32
  }
  func.func @transform_3(%arg0: i32) -> (i32, i32) {
    %c0_i32 = arith.constant 0 : i32
    %c0_i32_0 = arith.constant 0 : i32
    %c0_i32_1 = arith.constant 0 : i32
    return %c0_i32, %c0_i32_0 : i32, i32
  }
  func.func @transform_4(%arg0: i32) -> (i32, i32) {
    %c0_i32 = arith.constant 0 : i32
    %c0_i32_0 = arith.constant 0 : i32
    %c0_i32_1 = arith.constant 0 : i32
    return %c0_i32, %c0_i32_0 : i32, i32
  }
  func.func @transform_5(%arg0: i32) -> (i32, i32) {
    %c0_i32 = arith.constant 0 : i32
    %c0_i32_0 = arith.constant 0 : i32
    return %arg0, %c0_i32 : i32, i32
  }
}

</mosaic_0001>

<llo_original>
// kernel: tile.13
$region0: #{tile.13}
  #allocation0 [shape = 's32[1]{0}', space=sflag, size = 0x4, scoped, tag = 'scoped memory for tile.13']
  %s0 = inlined_call_operand.vmem [shape: f32[32], index: 0, kind: input, shape index: {}]
  %s1 = inlined_call_operand.vmem [shape: f32[8,32], index: 1, kind: output, shape index: {}]
  // Predicated region
  $region2: #{tile.13} parent=0 // pred_check
    _
  $region3: #{tile.13} parent=0 // pred_check_branch
    %3 = sbr.rel (0) target = $region5
  $region4: #{tile.13} parent=0 // pred_region
    _
  $region5: #{tile.13} parent=0 // pred_fallthru
    _
  %v4 = vld [vmem:[%s0] ss:$0 sm:$0xff]
  %5 = vst [vmem:[%s1] sm:$0xff] %v4

// kernel: tile.14
$region0: #{tile.14}
  %s0 = inlined_call_operand.vmem [shape: f32[8,32], index: 0, kind: input, shape index: {}]
  %s1 = inlined_call_operand.vmem [shape: f32[1,256], index: 1, kind: output, shape index: {}]
  $region1: #{tile.14} parent=0
    #allocation0 [shape = 'u8[8192]{0}', space=vmem, size = 0x2000, scoped, tag = 'scoped mem for output reshape']
    %s2 = smov 3
    %v3 = vld [vmem:[%s0] ss:$4 sm:%s2]
    %vm4 = vcmask 261120
    %5 = vst.msk [vmem:[#allocation0] ss:$8 sm:$0x3] %vm4, %v3
    %s6 = scalar_lea.vmem %s0, 3
    %s7 = smov 3
    %v8 = vld [vmem:[%s6] ss:$4 sm:%s7]
    %9 = vrot.lane.b32.xlu0 %v8, 96
    %v10 = vpop.permute.xlu0 %9
    %vm11 = vcmask 1048320
    %12 = vst.msk [vmem:[#allocation0] ss:$8 sm:$0x3] %vm11, %v10
    %s13 = scalar_lea.vmem %s0, 2
    %s14 = smov 3
    %v15 = vld [vmem:[%s13] ss:$4 sm:%s14]
    %16 = vrot.lane.b32.xlu0 %v15, 64
    %v17 = vpop.permute.xlu0 %16
    %vm18 = vcmask 785920
    %19 = vst.msk [vmem:[#allocation0] ss:$8 sm:$0x3] %vm18, %v17
    %s20 = scalar_lea.vmem %s0, 1
    %s21 = smov 3
    %v22 = vld [vmem:[%s20] ss:$4 sm:%s21]
    %23 = vrot.lane.b32.xlu0 %v22, 32
    %v24 = vpop.permute.xlu0 %23
    %vm25 = vcmask 523520
    %26 = vst.msk [vmem:[#allocation0] ss:$8 sm:$0x3] %vm25, %v24
    %s28 = sshll.u32 1, 1
    %s29 = ssub.s32 %s28, 1
    %v31 = vld [vmem:[#allocation0] sm:%s29]
    %s32 = sshll.u32 1, 1
    %s33 = ssub.s32 %s32, 1
    %34 = vst [vmem:[%s1] sm:%s33] %v31
    %s35 = scalar_lea.vmem [#allocation0], 8
    %v36 = vld [vmem:[%s35] sm:%s29]
    %s37 = sshll.u32 1, 1
    %s38 = ssub.s32 %s37, 1
    %s39 = scalar_lea.vmem %s1, 1
    %40 = vst [vmem:[%s39] sm:%s38] %v36

// kernel: filter_layer.1
$region0: #{filter_layer.1}
  #allocation0 [shape = 'u32[]', space=smem, size = 0x4, offset = 0x4, fixed_abs, tag = 'smem constant byte address 0x4 - core index']
  #allocation1 [shape = 'u32[144,128]{1,0:T(1,128)}', space=vmem, size = 0x12000, scoped, tag = 'internal scratch']
  %s0 = inlined_call_operand.vmem [shape: f32[8,256], index: 0, kind: input, shape index: {}]
  %s1 = inlined_call_operand.vmem [shape: f32[256,256], index: 1, kind: input, shape index: {}]
  %s2 = inlined_call_operand.vmem [shape: bf16[256,256], index: 2, kind: input, shape index: {}]
  %s3 = inlined_call_operand.vmem [shape: f32[1,256], index: 3, kind: input, shape index: {}]
  %s4 = inlined_call_operand.vmem [shape: f32[1,256], index: 4, kind: input, shape index: {}]
  %s5 = inlined_call_operand.vmem [shape: f32[8,256], index: 5, kind: output, shape index: {}]
  %s6 = sld [smem:[#allocation0]]
  $region30: #{filter_layer.1} parent=0
    _
  %s8 = ssub.s32 1, %s6
  %s9 = scalar_select 0, %s8, %s6
  // Predicated region
  $region2: #{filter_layer.1} parent=0 // pred_check
    _
  $region3: #{filter_layer.1} parent=0 // pred_check_branch
    %11 = sbr.rel (0) target = $region5
  $region4: #{filter_layer.1} parent=0 // pred_region
    _
  $region5: #{filter_layer.1} parent=0 // pred_fallthru
    _
  // Predicated region
  $region6: #{filter_layer.1} parent=0 // pred_check
    _
  $region7: #{filter_layer.1} parent=0 // pred_check_branch
    %13 = sbr.rel (0) target = $region9
  $region8: #{filter_layer.1} parent=0 // pred_region
    _
  $region9: #{filter_layer.1} parent=0 // pred_fallthru
    _
  // Predicated region
  $region10: #{filter_layer.1} parent=0 // pred_check
    _
  $region11: #{filter_layer.1} parent=0 // pred_check_branch
    %15 = sbr.rel (0) target = $region13
  $region12: #{filter_layer.1} parent=0 // pred_region
    _
  $region13: #{filter_layer.1} parent=0 // pred_fallthru
    _
  // Predicated region
  $region14: #{filter_layer.1} parent=0 // pred_check
    _
  $region15: #{filter_layer.1} parent=0 // pred_check_branch
    %17 = sbr.rel (0) target = $region17
  $region16: #{filter_layer.1} parent=0 // pred_region
    _
  $region17: #{filter_layer.1} parent=0 // pred_fallthru
    _
  // Predicated region
  $region18: #{filter_layer.1} parent=0 // pred_check
    _
  $region19: #{filter_layer.1} parent=0 // pred_check_branch
    %19 = sbr.rel (0) target = $region21
  $region20: #{filter_layer.1} parent=0 // pred_region
    _
  $region21: #{filter_layer.1} parent=0 // pred_fallthru
    _
  %v20 = vld [vmem:[%s0] sm:$0xff]
  %v21 = vld [vmem:[%s0 + $0x8] sm:$0xff]
  %v22 = vld [vmem:[%s1] sm:$0xff]
  %v23 = vld [vmem:[%s1 + $0x8] sm:$0xff]
  %v24 = vld [vmem:[%s1 + $0x10] sm:$0xff]
  %v25 = vld [vmem:[%s1 + $0x18] sm:$0xff]
  %v26 = vld [vmem:[%s1 + $0x20] sm:$0xff]
  %v27 = vld [vmem:[%s1 + $0x28] sm:$0xff]
  %v28 = vld [vmem:[%s1 + $0x30] sm:$0xff]
  %v29 = vld [vmem:[%s1 + $0x38] sm:$0xff]
  %v30 = vld [vmem:[%s1 + $0x40] sm:$0xff]
  %v31 = vld [vmem:[%s1 + $0x48] sm:$0xff]
  %v32 = vld [vmem:[%s1 + $0x50] sm:$0xff]
  %v33 = vld [vmem:[%s1 + $0x58] sm:$0xff]
  %v34 = vld [vmem:[%s1 + $0x60] sm:$0xff]
  %v35 = vld [vmem:[%s1 + $0x68] sm:$0xff]
  %v36 = vld [vmem:[%s1 + $0x70] sm:$0xff]
  %v37 = vld [vmem:[%s1 + $0x78] sm:$0xff]
  %v38 = vld [vmem:[%s1 + $0x80] sm:$0xff]
  %v39 = vld [vmem:[%s1 + $0x88] sm:$0xff]
  %v40 = vld [vmem:[%s1 + $0x90] sm:$0xff]
  %v41 = vld [vmem:[%s1 + $0x98] sm:$0xff]
  %v42 = vld [vmem:[%s1 + $0xa0] sm:$0xff]
  %v43 = vld [vmem:[%s1 + $0xa8] sm:$0xff]
  %v44 = vld [vmem:[%s1 + $0xb0] sm:$0xff]
  %v45 = vld [vmem:[%s1 + $0xb8] sm:$0xff]
  %v46 = vld [vmem:[%s1 + $0xc0] sm:$0xff]
  %v47 = vld [vmem:[%s1 + $0xc8] sm:$0xff]
  %v48 = vld [vmem:[%s1 + $0xd0] sm:$0xff]
  %v49 = vld [vmem:[%s1 + $0xd8] sm:$0xff]
  %v50 = vld [vmem:[%s1 + $0xe0] sm:$0xff]
  %v51 = vld [vmem:[%s1 + $0xe8] sm:$0xff]
  %v52 = vld [vmem:[%s1 + $0xf0] sm:$0xff]
  %v53 = vld [vmem:[%s1 + $0xf8] sm:$0xff]
  %v54 = vld [vmem:[%s1 + $0x100] sm:$0xff]
  %v55 = vld [vmem:[%s1 + $0x108] sm:$0xff]
  %v56 = vld [vmem:[%s1 + $0x110] sm:$0xff]
  %v57 = vld [vmem:[%s1 + $0x118] sm:$0xff]
  %v58 = vld [vmem:[%s1 + $0x120] sm:$0xff]
  %v59 = vld [vmem:[%s1 + $0x128] sm:$0xff]
  %v60 = vld [vmem:[%s1 + $0x130] sm:$0xff]
  %v61 = vld [vmem:[%s1 + $0x138] sm:$0xff]
  %v62 = vld [vmem:[%s1 + $0x140] sm:$0xff]
  %v63 = vld [vmem:[%s1 + $0x148] sm:$0xff]
  %v64 = vld [vmem:[%s1 + $0x150] sm:$0xff]
  %v65 = vld [vmem:[%s1 + $0x158] sm:$0xff]
  %v66 = vld [vmem:[%s1 + $0x160] sm:$0xff]
  %v67 = vld [vmem:[%s1 + $0x168] sm:$0xff]
  %v68 = vld [vmem:[%s1 + $0x170] sm:$0xff]
  %v69 = vld [vmem:[%s1 + $0x178] sm:$0xff]
  %v70 = vld [vmem:[%s1 + $0x180] sm:$0xff]
  %v71 = vld [vmem:[%s1 + $0x188] sm:$0xff]
  %v72 = vld [vmem:[%s1 + $0x190] sm:$0xff]
  %v73 = vld [vmem:[%s1 + $0x198] sm:$0xff]
  %v74 = vld [vmem:[%s1 + $0x1a0] sm:$0xff]
  %v75 = vld [vmem:[%s1 + $0x1a8] sm:$0xff]
  %v76 = vld [vmem:[%s1 + $0x1b0] sm:$0xff]
  %v77 = vld [vmem:[%s1 + $0x1b8] sm:$0xff]
  %v78 = vld [vmem:[%s1 + $0x1c0] sm:$0xff]
  %v79 = vld [vmem:[%s1 + $0x1c8] sm:$0xff]
  %v80 = vld [vmem:[%s1 + $0x1d0] sm:$0xff]
  %v81 = vld [vmem:[%s1 + $0x1d8] sm:$0xff]
  %v82 = vld [vmem:[%s1 + $0x1e0] sm:$0xff]
  %v83 = vld [vmem:[%s1 + $0x1e8] sm:$0xff]
  %v84 = vld [vmem:[%s1 + $0x1f0] sm:$0xff]
  %v85 = vld [vmem:[%s1 + $0x1f8] sm:$0xff]
  %86 = vmatprep.subr.mxu0 %v53
  %87 = vmatpush1.msra.mxu0 %v52
  %88 = vmatprep.subr.mxu0 %v51
  %89 = vmatpush1.msra.mxu0 %v50
  %90 = vmatprep.subr.mxu0 %v49
  %91 = vmatpush1.msra.mxu0 %v48
  %92 = vmatprep.subr.mxu0 %v47
  %93 = vmatpush1.msra.mxu0 %v46
  %94 = vmatprep.subr.mxu0 %v45
  %95 = vmatpush1.msra.mxu0 %v44
  %96 = vmatprep.subr.mxu0 %v43
  %97 = vmatpush1.msra.mxu0 %v42
  %98 = vmatprep.subr.mxu0 %v41
  %99 = vmatpush1.msra.mxu0 %v40
  %100 = vmatprep.subr.mxu0 %v39
  %101 = vmatpush1.msra.mxu0 %v38
  %102 = vmatprep.subr.mxu0 %v37
  %103 = vmatpush1.msra.mxu0 %v36
  %104 = vmatprep.subr.mxu0 %v35
  %105 = vmatpush1.msra.mxu0 %v34
  %106 = vmatprep.subr.mxu0 %v33
  %107 = vmatpush1.msra.mxu0 %v32
  %108 = vmatprep.subr.mxu0 %v31
  %109 = vmatpush1.msra.mxu0 %v30
  %110 = vmatprep.subr.mxu0 %v29
  %111 = vmatpush1.msra.mxu0 %v28
  %112 = vmatprep.subr.mxu0 %v27
  %113 = vmatpush1.msra.mxu0 %v26
  %114 = vmatprep.subr.mxu0 %v25
  %115 = vmatpush1.msra.mxu0 %v24
  %116 = vmatprep.subr.mxu0 %v23
  %117 = vmatpush1.msra.mxu0 %v22
  %118 = vmatprep.subr.mxu0 %v85
  %119 = vmatpush2.msra.mxu0 %v84
  %120 = vmatprep.subr.mxu0 %v83
  %121 = vmatpush2.msra.mxu0 %v82
  %122 = vmatprep.subr.mxu0 %v81
  %123 = vmatpush2.msra.mxu0 %v80
  %124 = vmatprep.subr.mxu0 %v79
  %125 = vmatpush2.msra.mxu0 %v78
  %126 = vmatprep.subr.mxu0 %v77
  %127 = vmatpush2.msra.mxu0 %v76
  %128 = vmatprep.subr.mxu0 %v75
  %129 = vmatpush2.msra.mxu0 %v74
  %130 = vmatprep.subr.mxu0 %v73
  %131 = vmatpush2.msra.mxu0 %v72
  %132 = vmatprep.subr.mxu0 %v71
  %133 = vmatpush2.msra.mxu0 %v70
  %134 = vmatprep.subr.mxu0 %v69
  %135 = vmatpush2.msra.mxu0 %v68
  %136 = vmatprep.subr.mxu0 %v67
  %137 = vmatpush2.msra.mxu0 %v66
  %138 = vmatprep.subr.mxu0 %v65
  %139 = vmatpush2.msra.mxu0 %v64
  %140 = vmatprep.subr.mxu0 %v63
  %141 = vmatpush2.msra.mxu0 %v62
  %142 = vmatprep.subr.mxu0 %v61
  %143 = vmatpush2.msra.mxu0 %v60
  %144 = vmatprep.subr.mxu0 %v59
  %145 = vmatpush2.msra.mxu0 %v58
  %146 = vmatprep.subr.mxu0 %v57
  %147 = vmatpush2.msra.mxu0 %v56
  %148 = vmatprep.subr.mxu0 %v55
  %149 = vmatpush2.msra.mxu0 %v54
  %150 = vmatprep.mubr.f32.mxu0 %v21
  %151 = vmatmul.mubr.f32.gmra.mxu0 %v20
  %v152 = vpop.f32.mrf.mxu0
  %v153 = vadd.f32 %v20, %v152
  %v154 = vpop.f32.mrf.mxu0
  %v155 = vadd.f32 %v21, %v154
  %156 = vdwg.mxu0
  %v157 = vmul.f32 %v153, %v153
  %v158 = vmul.f32 %v155, %v155
  %v159 = vpack.c.bf16 %v157, %v157
  %v160 = vpack.c.bf16 %v158, %v158
  %v161 = vld [vmem:[%s2] sm:$0xff]
  %v162 = vld [vmem:[%s2 + $0x8] sm:$0xff]
  %v163 = vld [vmem:[%s2 + $0x10] sm:$0xff]
  %v164 = vld [vmem:[%s2 + $0x18] sm:$0xff]
  %v165 = vld [vmem:[%s2 + $0x20] sm:$0xff]
  %v166 = vld [vmem:[%s2 + $0x28] sm:$0xff]
  %v167 = vld [vmem:[%s2 + $0x30] sm:$0xff]
  %v168 = vld [vmem:[%s2 + $0x38] sm:$0xff]
  %v169 = vld [vmem:[%s2 + $0x40] sm:$0xff]
  %v170 = vld [vmem:[%s2 + $0x48] sm:$0xff]
  %v171 = vld [vmem:[%s2 + $0x50] sm:$0xff]
  %v172 = vld [vmem:[%s2 + $0x58] sm:$0xff]
  %v173 = vld [vmem:[%s2 + $0x60] sm:$0xff]
  %v174 = vld [vmem:[%s2 + $0x68] sm:$0xff]
  %v175 = vld [vmem:[%s2 + $0x70] sm:$0xff]
  %v176 = vld [vmem:[%s2 + $0x78] sm:$0xff]
  %v177 = vld [vmem:[%s2 + $0x80] sm:$0xff]
  %v178 = vld [vmem:[%s2 + $0x88] sm:$0xff]
  %v179 = vld [vmem:[%s2 + $0x90] sm:$0xff]
  %v180 = vld [vmem:[%s2 + $0x98] sm:$0xff]
  %v181 = vld [vmem:[%s2 + $0xa0] sm:$0xff]
  %v182 = vld [vmem:[%s2 + $0xa8] sm:$0xff]
  %v183 = vld [vmem:[%s2 + $0xb0] sm:$0xff]
  %v184 = vld [vmem:[%s2 + $0xb8] sm:$0xff]
  %v185 = vld [vmem:[%s2 + $0xc0] sm:$0xff]
  %v186 = vld [vmem:[%s2 + $0xc8] sm:$0xff]
  %v187 = vld [vmem:[%s2 + $0xd0] sm:$0xff]
  %v188 = vld [vmem:[%s2 + $0xd8] sm:$0xff]
  %v189 = vld [vmem:[%s2 + $0xe0] sm:$0xff]
  %v190 = vld [vmem:[%s2 + $0xe8] sm:$0xff]
  %v191 = vld [vmem:[%s2 + $0xf0] sm:$0xff]
  %v192 = vld [vmem:[%s2 + $0xf8] sm:$0xff]
  %v225 = vunpack.c.l.b16 %v161
  %v226 = vunpack.c.h.b16 %v161
  %v227 = vunpack.c.l.b16 %v162
  %v228 = vunpack.c.h.b16 %v162
  %v229 = vunpack.c.l.b16 %v163
  %v230 = vunpack.c.h.b16 %v163
  %v231 = vunpack.c.l.b16 %v164
  %v232 = vunpack.c.h.b16 %v164
  %v233 = vunpack.c.l.b16 %v165
  %v234 = vunpack.c.h.b16 %v165
  %v235 = vunpack.c.l.b16 %v166
  %v236 = vunpack.c.h.b16 %v166
  %v237 = vunpack.c.l.b16 %v167
  %v238 = vunpack.c.h.b16 %v167
  %v239 = vunpack.c.l.b16 %v168
  %v240 = vunpack.c.h.b16 %v168
  %v241 = vunpack.c.l.b16 %v169
  %v242 = vunpack.c.h.b16 %v169
  %v243 = vunpack.c.l.b16 %v170
  %v244 = vunpack.c.h.b16 %v170
  %v245 = vunpack.c.l.b16 %v171
  %v246 = vunpack.c.h.b16 %v171
  %v247 = vunpack.c.l.b16 %v172
  %v248 = vunpack.c.h.b16 %v172
  %v249 = vunpack.c.l.b16 %v173
  %v250 = vunpack.c.h.b16 %v173
  %v251 = vunpack.c.l.b16 %v174
  %v252 = vunpack.c.h.b16 %v174
  %v253 = vunpack.c.l.b16 %v175
  %v254 = vunpack.c.h.b16 %v175
  %v255 = vunpack.c.l.b16 %v176
  %v256 = vunpack.c.h.b16 %v176
  %v257 = vunpack.c.l.b16 %v177
  %v258 = vunpack.c.h.b16 %v177
  %v259 = vunpack.c.l.b16 %v178
  %v260 = vunpack.c.h.b16 %v178
  %v261 = vunpack.c.l.b16 %v179
  %v262 = vunpack.c.h.b16 %v179
  %v263 = vunpack.c.l.b16 %v180
  %v264 = vunpack.c.h.b16 %v180
  %v265 = vunpack.c.l.b16 %v181
  %v266 = vunpack.c.h.b16 %v181
  %v267 = vunpack.c.l.b16 %v182
  %v268 = vunpack.c.h.b16 %v182
  %v269 = vunpack.c.l.b16 %v183
  %v270 = vunpack.c.h.b16 %v183
  %v271 = vunpack.c.l.b16 %v184
  %v272 = vunpack.c.h.b16 %v184
  %v273 = vunpack.c.l.b16 %v185
  %v274 = vunpack.c.h.b16 %v185
  %v275 = vunpack.c.l.b16 %v186
  %v276 = vunpack.c.h.b16 %v186
  %v277 = vunpack.c.l.b16 %v187
  %v278 = vunpack.c.h.b16 %v187
  %v279 = vunpack.c.l.b16 %v188
  %v280 = vunpack.c.h.b16 %v188
  %v281 = vunpack.c.l.b16 %v189
  %v282 = vunpack.c.h.b16 %v189
  %v283 = vunpack.c.l.b16 %v190
  %v284 = vunpack.c.h.b16 %v190
  %v285 = vunpack.c.l.b16 %v191
  %v286 = vunpack.c.h.b16 %v191
  %v287 = vunpack.c.l.b16 %v192
  %v288 = vunpack.c.h.b16 %v192
  %v289 = vpack.c.b16 %v227, %v225
  %v290 = vpack.c.b16 %v228, %v226
  %v291 = vpack.c.b16 %v231, %v229
  %v292 = vpack.c.b16 %v232, %v230
  %v293 = vpack.c.b16 %v235, %v233
  %v294 = vpack.c.b16 %v236, %v234
  %v295 = vpack.c.b16 %v239, %v237
  %v296 = vpack.c.b16 %v240, %v238
  %v297 = vpack.c.b16 %v243, %v241
  %v298 = vpack.c.b16 %v244, %v242
  %v299 = vpack.c.b16 %v247, %v245
  %v300 = vpack.c.b16 %v248, %v246
  %v301 = vpack.c.b16 %v251, %v249
  %v302 = vpack.c.b16 %v252, %v250
  %v303 = vpack.c.b16 %v255, %v253
  %v304 = vpack.c.b16 %v256, %v254
  %v305 = vpack.c.b16 %v259, %v257
  %v306 = vpack.c.b16 %v260, %v258
  %v307 = vpack.c.b16 %v263, %v261
  %v308 = vpack.c.b16 %v264, %v262
  %v309 = vpack.c.b16 %v267, %v265
  %v310 = vpack.c.b16 %v268, %v266
  %v311 = vpack.c.b16 %v271, %v269
  %v312 = vpack.c.b16 %v272, %v270
  %v313 = vpack.c.b16 %v275, %v273
  %v314 = vpack.c.b16 %v276, %v274
  %v315 = vpack.c.b16 %v279, %v277
  %v316 = vpack.c.b16 %v280, %v278
  %v317 = vpack.c.b16 %v283, %v281
  %v318 = vpack.c.b16 %v284, %v282
  %v319 = vpack.c.b16 %v287, %v285
  %v320 = vpack.c.b16 %v288, %v286
  %353 = vmatprep.subr.bf16.mxu0 %v304
  %354 = vmatpush1.bf16.msra.mxu0 %v303
  %355 = vmatprep.subr.bf16.mxu0 %v302
  %356 = vmatpush1.bf16.msra.mxu0 %v301
  %357 = vmatprep.subr.bf16.mxu0 %v300
  %358 = vmatpush1.bf16.msra.mxu0 %v299
  %359 = vmatprep.subr.bf16.mxu0 %v298
  %360 = vmatpush1.bf16.msra.mxu0 %v297
  %361 = vmatprep.subr.bf16.mxu0 %v296
  %362 = vmatpush1.bf16.msra.mxu0 %v295
  %363 = vmatprep.subr.bf16.mxu0 %v294
  %364 = vmatpush1.bf16.msra.mxu0 %v293
  %365 = vmatprep.subr.bf16.mxu0 %v292
  %366 = vmatpush1.bf16.msra.mxu0 %v291
  %367 = vmatprep.subr.bf16.mxu0 %v290
  %368 = vmatpush1.bf16.msra.mxu0 %v289
  %369 = vmatprep.subr.bf16.mxu0 %v320
  %370 = vmatpush2.bf16.msra.mxu0 %v319
  %371 = vmatprep.subr.bf16.mxu0 %v318
  %372 = vmatpush2.bf16.msra.mxu0 %v317
  %373 = vmatprep.subr.bf16.mxu0 %v316
  %374 = vmatpush2.bf16.msra.mxu0 %v315
  %375 = vmatprep.subr.bf16.mxu0 %v314
  %376 = vmatpush2.bf16.msra.mxu0 %v313
  %377 = vmatprep.subr.bf16.mxu0 %v312
  %378 = vmatpush2.bf16.msra.mxu0 %v311
  %379 = vmatprep.subr.bf16.mxu0 %v310
  %380 = vmatpush2.bf16.msra.mxu0 %v309
  %381 = vmatprep.subr.bf16.mxu0 %v308
  %382 = vmatpush2.bf16.msra.mxu0 %v307
  %383 = vmatprep.subr.bf16.mxu0 %v306
  %384 = vmatpush2.bf16.msra.mxu0 %v305
  %385 = vmatprep.mubr.bf16.mxu0 %v160
  %386 = vmatmul.mubr.bf16.gmra.mxu0 %v159
  %v387 = vpop.f32.mrf.mxu0
  %v388 = vadd.f32 1e-12, %v387
  %v389 = vpop.f32.mrf.mxu0
  %v390 = vadd.f32 1e-12, %v389
  %v391 = vpop.f32.mrf.mxu0
  %v392 = vpop.f32.mrf.mxu0
  %393 = vdwg.mxu0
  %v394 = vrsqrt.pop %v388
  %v395 = vrsqrt.pop %v390
  %v396 = vmul.f32 %v153, %v394
  %v397 = vmul.f32 %v155, %v395
  %v398 = vld [vmem:[%s3] sm:$0x3]
  %v400 = vlaneseq
  %v401 = vshrl.u32 %v400, 7
  %v402 = vsub.s32 0, %v401
  %v403 = vrot.slane %v398, %v402
  %v404 = vlaneseq
  %v405 = vshrl.u32 %v404, 7
  %v406 = vsub.s32 1, %v405
  %v407 = vrot.slane %v398, %v406
  %v410 = vmul.f32 %v396, %v403
  %v411 = vmul.f32 %v397, %v407
  %v412 = vld [vmem:[%s4] sm:$0x3]
  %v414 = vlaneseq
  %v415 = vshrl.u32 %v414, 7
  %v416 = vsub.s32 0, %v415
  %v417 = vrot.slane %v412, %v416
  %v418 = vlaneseq
  %v419 = vshrl.u32 %v418, 7
  %v420 = vsub.s32 1, %v419
  %v421 = vrot.slane %v412, %v420
  %v424 = vadd.f32 %v410, %v417
  %v425 = vadd.f32 %v411, %v421
  %426 = vst [vmem:[%s5] sm:$0xff] %v424
  %427 = vst [vmem:[%s5 + $0x8] sm:$0xff] %v425
  // Predicated region
  $region22: #{filter_layer.1} parent=0 // pred_check
    _
  $region23: #{filter_layer.1} parent=0 // pred_check_branch
    %429 = sbr.rel (0) target = $region25
  $region24: #{filter_layer.1} parent=0 // pred_region
    _
  $region25: #{filter_layer.1} parent=0 // pred_fallthru
    _
  // Predicated region
  $region26: #{filter_layer.1} parent=0 // pred_check
    _
  $region27: #{filter_layer.1} parent=0 // pred_check_branch
    %431 = sbr.rel (0) target = $region29
  $region28: #{filter_layer.1} parent=0 // pred_region
    _
  $region29: #{filter_layer.1} parent=0 // pred_fallthru
    _

</llo_original>
